<compile_context>
chip_gen: v7x
topology: tpu7x:2x2x1
jax: 0.10.0
libtpu: 0.0.40
codegen_flags: <defaults>
</compile_context>

<pallas_src>
import jax
import jax.numpy as jnp
from jax.experimental import pallas as pl
from jax.experimental.pallas import tpu as pltpu


# ----------------------------- fused forward kernel -----------------------------

def _fused_forward_kernel(x_ref,
                          ew1_ref, eb1_ref, ew2_ref, eb2_ref,
                          dw1_ref, db1_ref, dw2_ref, db2_ref,
                          o_ref):
    """One block of BM batch rows per grid step.

    x_ref: (BM, L, n_in)  ->  o_ref: (BM, n_out_dec)
    """
    bm, seq_len, n_in = x_ref.shape

    # Flatten batch*seq so the matmul chain has a real M dimension (fills the MXU,
    # amortizes per-step overhead).  Leading-dim merge: layout no-op.
    x = x_ref[...].reshape(bm * seq_len, n_in)

    # Encoder: ReLU(x @ W1 + b1) @ W2 + b2   (f32 accumulation; f32 elementwise)
    h = jnp.dot(x, ew1_ref[...], preferred_element_type=jnp.float32) + eb1_ref[...]
    h = jnp.maximum(h, 0.0)
    z_enc = (jnp.dot(h.astype(ew2_ref.dtype), ew2_ref[...],
                     preferred_element_type=jnp.float32) + eb2_ref[...])

    # Decoder layer 1: ReLU(z_enc @ W1 + b1)
    d = (jnp.dot(z_enc.astype(dw1_ref.dtype), dw1_ref[...],
                 preferred_element_type=jnp.float32) + db1_ref[...])
    d = jnp.maximum(d, 0.0)                                   # (BM*L, Hd)

    # Sequence mean hoisted above the final affine layer (mathematically exact).
    d_mean = jnp.mean(d.reshape(bm, seq_len, d.shape[-1]), axis=1)   # (BM, Hd)

    # Final affine on pooled features: (BM, Hd) @ (Hd, n_out) + b
    z = (jnp.dot(d_mean.astype(dw2_ref.dtype), dw2_ref[...],
                 preferred_element_type=jnp.float32) + db2_ref[...])

    o_ref[...] = z.astype(o_ref.dtype)                        # dense (BM, n_out) store


def light_hyper_classifier(x, params, *, block_batch=None, compute_dtype=jnp.float32):
    """x: (B, L, n_in) float32 -> (B, n_out_dec) float32.

    compute_dtype: dtype of the MXU inputs (x / weight matrices).  Keep f32 to match
    the reference bit-for-bit-ish; set jnp.bfloat16 on v6e/v7x once matmul-bound.
    """
    B, L, n_in = x.shape
    ew1, eb1 = params["enc_w1"], params["enc_b1"]
    ew2, eb2 = params["enc_w2"], params["enc_b2"]
    dw1, db1 = params["dec_w1"], params["dec_b1"]
    dw2, db2 = params["dec_w2"], params["dec_b2"]
    He, E = ew1.shape[1], ew2.shape[1]
    Hd, n_out = dw1.shape[1], dw2.shape[1]

    # --- choose BM batch rows per grid step: target >= ~512 flattened rows per step
    #     to amortize the ~0.35 us fixed step overhead and fill the MXU M dimension.
    if block_batch is None:
        bm = max(1, 512 // max(L, 1))
    else:
        bm = int(block_batch)
    if bm >= B:
        bm = B            # tiny workload: single grid step, everything resident
    else:
        # multi-step: keep the (bm, n_out) output tile sublane-dense (multiple of 8).
        # (On v7x, pick bm ~= ceil(B/2) rounded to 8 so grid >= 2 steps shard across both TCs.)
        bm = max(8, (bm // 8) * 8)
    grid_b = -(-B // bm)
    B_pad = grid_b * bm
    if B_pad != B:
        # Row-wise computation: zero-padded batch rows never mix with real rows.
        x = jnp.pad(x, ((0, B_pad - B), (0, 0), (0, 0)))

    # MXU-input dtype (bf16 on v6e/v7x); accumulation & elementwise stay f32 (v5e-safe).
    x_c = x.astype(compute_dtype)
    ew1c, ew2c = ew1.astype(compute_dtype), ew2.astype(compute_dtype)
    dw1c, dw2c = dw1.astype(compute_dtype), dw2.astype(compute_dtype)

    # Weights / biases: full-array blocks, constant index_map -> resident in VMEM
    # across grid steps.  (At large sizes: add pipeline_mode=pl.Buffered(1) here.)
    def wspec(shape):
        return pl.BlockSpec(shape, lambda i: (0,) * len(shape))

    out = pl.pallas_call(
        _fused_forward_kernel,
        out_shape=jax.ShapeDtypeStruct((B_pad, n_out), jnp.float32),
        grid=(grid_b,),
        in_specs=[
            pl.BlockSpec((bm, L, n_in), lambda i: (i, 0, 0)),   # BM batch rows per step
            wspec((n_in, He)), wspec((1, He)),
            wspec((He, E)),    wspec((1, E)),
            wspec((E, Hd)),    wspec((1, Hd)),
            wspec((Hd, n_out)), wspec((1, n_out)),
        ],
        out_specs=pl.BlockSpec((bm, n_out), lambda i: (i, 0)),  # dense (BM, n_out) tile
        compiler_params=pltpu.CompilerParams(
            dimension_semantics=("parallel",)),                 # v7x megacore over batch blocks
    )(x_c, ew1c, eb1, ew2c, eb2, dw1c, db1, dw2c, db2)

    if B_pad != B:
        out = out[:B]
    return out


# ----------------------------- parameter init -----------------------------

def _linear_init(key, fan_in, fan_out):
    # PyTorch nn.Linear default: U(-1/sqrt(fan_in), 1/sqrt(fan_in)).
    kw, kb = jax.random.split(key)
    bound = 1.0 / (fan_in ** 0.5)
    w = jax.random.uniform(kw, (fan_in, fan_out), jnp.float32, -bound, bound)
    b = jax.random.uniform(kb, (1, fan_out), jnp.float32, -bound, bound)
    return w, b


def init_params(key, n_in, n_hidden_enc, n_out_enc, n_hidden_dec=16, n_out_dec=2):
    k1, k2, k3, k4 = jax.random.split(key, 4)
    enc_w1, enc_b1 = _linear_init(k1, n_in, n_hidden_enc)
    enc_w2, enc_b2 = _linear_init(k2, n_hidden_enc, n_out_enc)
    dec_w1, dec_b1 = _linear_init(k3, n_out_enc, n_hidden_dec)
    dec_w2, dec_b2 = _linear_init(k4, n_hidden_dec, n_out_dec)
    return {
        "enc_w1": enc_w1, "enc_b1": enc_b1, "enc_w2": enc_w2, "enc_b2": enc_b2,
        "dec_w1": dec_w1, "dec_b1": dec_b1, "dec_w2": dec_w2, "dec_b2": dec_b2,
    }


# ----------------------------- pure-JAX reference (live path) -----------------------------

def _reference(x, params):
    h = jax.nn.relu(x @ params["enc_w1"] + params["enc_b1"])
    z_enc = h @ params["enc_w2"] + params["enc_b2"]
    d = jax.nn.relu(z_enc @ params["dec_w1"] + params["dec_b1"])
    z = d @ params["dec_w2"] + params["dec_b2"]
    return z.mean(axis=1)


# ----------------------------- demo -----------------------------

if __name__ == "__main__":
    # Small shapes consistent with the module.  (The reference's dead HyperMixer branch
    # would additionally need input_size == seq_len and enc dims divisible by mlps=4;
    # none of that affects the output.)
    B, seq_len = 2, 16
    n_in, n_hidden_enc, n_out_enc = 8, 32, 16
    n_hidden_dec, n_out_dec = 16, 2

    key = jax.random.PRNGKey(0)
    kp, kx = jax.random.split(key)
    params = init_params(kp, n_in, n_hidden_enc, n_out_enc, n_hidden_dec, n_out_dec)
    x = jax.random.normal(kx, (B, seq_len, n_in), jnp.float32)

    fwd = jax.jit(light_hyper_classifier)
    out = fwd(x, params)
    jax.block_until_ready(out)

    assert out.shape == (B, n_out_dec), out.shape
    ref = _reference(x, params)
    assert jnp.allclose(out, ref, rtol=1e-4, atol=1e-4), (out, ref)
    print("KERNEL_OK")
</pallas_src>

<mosaic_0001>
module attributes {stable_mosaic.version = 11 : i64} {
  func.func @_fused_forward_kernel(%arg0: i32, %arg1: memref<2x16x8xf32, #tpu.memory_space<vmem>>, %arg2: memref<8x32xf32, #tpu.memory_space<vmem>>, %arg3: memref<1x32xf32, #tpu.memory_space<vmem>>, %arg4: memref<32x16xf32, #tpu.memory_space<vmem>>, %arg5: memref<1x16xf32, #tpu.memory_space<vmem>>, %arg6: memref<16x16xf32, #tpu.memory_space<vmem>>, %arg7: memref<1x16xf32, #tpu.memory_space<vmem>>, %arg8: memref<16x2xf32, #tpu.memory_space<vmem>>, %arg9: memref<1x2xf32, #tpu.memory_space<vmem>>, %arg10: memref<2x2xf32, #tpu.memory_space<vmem>>) attributes {dimension_semantics = [#tpu.dimension_semantics<parallel>], iteration_bounds = array<i64: 1>, scalar_prefetch = 0 : i64, scratch_operands = 0 : i64, tpu.core_type = #tpu.core_type<tc>, window_params = [{transform_indices = @transform_0, window_bounds = array<i64: 2, 16, 8>}, {pipeline_mode = #tpu.pipeline_mode<synchronous>, transform_indices = @transform_1, window_bounds = array<i64: 8, 32>}, {pipeline_mode = #tpu.pipeline_mode<synchronous>, transform_indices = @transform_2, window_bounds = array<i64: 1, 32>}, {pipeline_mode = #tpu.pipeline_mode<synchronous>, transform_indices = @transform_3, window_bounds = array<i64: 32, 16>}, {pipeline_mode = #tpu.pipeline_mode<synchronous>, transform_indices = @transform_4, window_bounds = array<i64: 1, 16>}, {pipeline_mode = #tpu.pipeline_mode<synchronous>, transform_indices = @transform_5, window_bounds = array<i64: 16, 16>}, {pipeline_mode = #tpu.pipeline_mode<synchronous>, transform_indices = @transform_6, window_bounds = array<i64: 1, 16>}, {pipeline_mode = #tpu.pipeline_mode<synchronous>, transform_indices = @transform_7, window_bounds = array<i64: 16, 2>}, {pipeline_mode = #tpu.pipeline_mode<synchronous>, transform_indices = @transform_8, window_bounds = array<i64: 1, 2>}, {transform_indices = @transform_9, window_bounds = array<i64: 2, 2>}]} {
    %c0 = arith.constant 0 : index
    %c0_0 = arith.constant 0 : index
    %c0_1 = arith.constant 0 : index
    %0 = vector.load %arg1[%c0, %c0_0, %c0_1] : memref<2x16x8xf32, #tpu.memory_space<vmem>>, vector<2x16x8xf32>
    %1 = vector.shape_cast %0 : vector<2x16x8xf32> to vector<32x8xf32>
    %c0_2 = arith.constant 0 : index
    %c0_3 = arith.constant 0 : index
    %2 = vector.load %arg2[%c0_2, %c0_3] : memref<8x32xf32, #tpu.memory_space<vmem>>, vector<8x32xf32>
    %cst = arith.constant dense<0.000000e+00> : vector<32x32xf32>
    %3 = tpu.matmul %1, %2, %cst {dimension_numbers = #tpu.dot_dimension_numbers<[1], [0], [0], [1], [0, 0, 1, 1], [], []>} : vector<32x8xf32>, vector<8x32xf32>, vector<32x32xf32> -> vector<32x32xf32>
    %c0_4 = arith.constant 0 : index
    %c0_5 = arith.constant 0 : index
    %4 = vector.load %arg3[%c0_4, %c0_5] : memref<1x32xf32, #tpu.memory_space<vmem>>, vector<1x32xf32>
    %5 = vector.broadcast %4 : vector<1x32xf32> to vector<32x32xf32>
    %6 = arith.addf %3, %5 : vector<32x32xf32>
    %cst_6 = arith.constant 0.000000e+00 : f32
    %7 = vector.broadcast %cst_6 : f32 to vector<32x32xf32>
    %8 = arith.maximumf %6, %7 : vector<32x32xf32>
    %c0_7 = arith.constant 0 : index
    %c0_8 = arith.constant 0 : index
    %9 = vector.load %arg4[%c0_7, %c0_8] : memref<32x16xf32, #tpu.memory_space<vmem>>, vector<32x16xf32>
    %cst_9 = arith.constant dense<0.000000e+00> : vector<32x16xf32>
    %10 = tpu.matmul %8, %9, %cst_9 {dimension_numbers = #tpu.dot_dimension_numbers<[1], [0], [0], [1], [0, 0, 1, 1], [], []>} : vector<32x32xf32>, vector<32x16xf32>, vector<32x16xf32> -> vector<32x16xf32>
    %c0_10 = arith.constant 0 : index
    %c0_11 = arith.constant 0 : index
    %11 = vector.load %arg5[%c0_10, %c0_11] : memref<1x16xf32, #tpu.memory_space<vmem>>, vector<1x16xf32>
    %12 = vector.broadcast %11 : vector<1x16xf32> to vector<32x16xf32>
    %13 = arith.addf %10, %12 : vector<32x16xf32>
    %c0_12 = arith.constant 0 : index
    %c0_13 = arith.constant 0 : index
    %14 = vector.load %arg6[%c0_12, %c0_13] : memref<16x16xf32, #tpu.memory_space<vmem>>, vector<16x16xf32>
    %cst_14 = arith.constant dense<0.000000e+00> : vector<32x16xf32>
    %15 = tpu.matmul %13, %14, %cst_14 {dimension_numbers = #tpu.dot_dimension_numbers<[1], [0], [0], [1], [0, 0, 1, 1], [], []>} : vector<32x16xf32>, vector<16x16xf32>, vector<32x16xf32> -> vector<32x16xf32>
    %c0_15 = arith.constant 0 : index
    %c0_16 = arith.constant 0 : index
    %16 = vector.load %arg7[%c0_15, %c0_16] : memref<1x16xf32, #tpu.memory_space<vmem>>, vector<1x16xf32>
    %17 = vector.broadcast %16 : vector<1x16xf32> to vector<32x16xf32>
    %18 = arith.addf %15, %17 : vector<32x16xf32>
    %cst_17 = arith.constant 0.000000e+00 : f32
    %19 = vector.broadcast %cst_17 : f32 to vector<32x16xf32>
    %20 = arith.maximumf %18, %19 : vector<32x16xf32>
    %21 = vector.shape_cast %20 : vector<32x16xf32> to vector<2x16x16xf32>
    %cst_18 = arith.constant dense<0.000000e+00> : vector<2x16xf32>
    %22 = vector.multi_reduction <add>, %21, %cst_18 [1] : vector<2x16x16xf32> to vector<2x16xf32>
    %cst_19 = arith.constant 1.600000e+01 : f32
    %23 = vector.broadcast %cst_19 : f32 to vector<2x16xf32>
    %24 = arith.divf %22, %23 : vector<2x16xf32>
    %c0_20 = arith.constant 0 : index
    %c0_21 = arith.constant 0 : index
    %25 = vector.load %arg8[%c0_20, %c0_21] : memref<16x2xf32, #tpu.memory_space<vmem>>, vector<16x2xf32>
    %cst_22 = arith.constant dense<0.000000e+00> : vector<2x2xf32>
    %26 = tpu.matmul %24, %25, %cst_22 {dimension_numbers = #tpu.dot_dimension_numbers<[1], [0], [0], [1], [0, 0, 1, 1], [], []>} : vector<2x16xf32>, vector<16x2xf32>, vector<2x2xf32> -> vector<2x2xf32>
    %c0_23 = arith.constant 0 : index
    %c0_24 = arith.constant 0 : index
    %27 = vector.load %arg9[%c0_23, %c0_24] : memref<1x2xf32, #tpu.memory_space<vmem>>, vector<1x2xf32>
    %28 = vector.broadcast %27 : vector<1x2xf32> to vector<2x2xf32>
    %29 = arith.addf %26, %28 : vector<2x2xf32>
    %c0_25 = arith.constant 0 : index
    %c0_26 = arith.constant 0 : index
    %30 = vector.load %arg10[%c0_25, %c0_26] : memref<2x2xf32, #tpu.memory_space<vmem>>, vector<2x2xf32>
    tpu.vector_store %arg10[%c0_25, %c0_26], %29 {strides = array<i32>} : memref<2x2xf32, #tpu.memory_space<vmem>>, vector<2x2xf32>,
    return
  }
  func.func @transform_0(%arg0: i32) -> (i32, i32, i32) {
    %c0_i32 = arith.constant 0 : i32
    %c0_i32_0 = arith.constant 0 : i32
    %c0_i32_1 = arith.constant 0 : i32
    return %arg0, %c0_i32, %c0_i32_0 : i32, i32, i32
  }
  func.func @transform_1(%arg0: i32) -> (i32, i32) {
    %c0_i32 = arith.constant 0 : i32
    %c0_i32_0 = arith.constant 0 : i32
    %c0_i32_1 = arith.constant 0 : i32
    return %c0_i32, %c0_i32_0 : i32, i32
  }
  func.func @transform_2(%arg0: i32) -> (i32, i32) {
    %c0_i32 = arith.constant 0 : i32
    %c0_i32_0 = arith.constant 0 : i32
    %c0_i32_1 = arith.constant 0 : i32
    return %c0_i32, %c0_i32_0 : i32, i32
  }
  func.func @transform_3(%arg0: i32) -> (i32, i32) {
    %c0_i32 = arith.constant 0 : i32
    %c0_i32_0 = arith.constant 0 : i32
    %c0_i32_1 = arith.constant 0 : i32
    return %c0_i32, %c0_i32_0 : i32, i32
  }
  func.func @transform_4(%arg0: i32) -> (i32, i32) {
    %c0_i32 = arith.constant 0 : i32
    %c0_i32_0 = arith.constant 0 : i32
    %c0_i32_1 = arith.constant 0 : i32
    return %c0_i32, %c0_i32_0 : i32, i32
  }
  func.func @transform_5(%arg0: i32) -> (i32, i32) {
    %c0_i32 = arith.constant 0 : i32
    %c0_i32_0 = arith.constant 0 : i32
    %c0_i32_1 = arith.constant 0 : i32
    return %c0_i32, %c0_i32_0 : i32, i32
  }
  func.func @transform_6(%arg0: i32) -> (i32, i32) {
    %c0_i32 = arith.constant 0 : i32
    %c0_i32_0 = arith.constant 0 : i32
    %c0_i32_1 = arith.constant 0 : i32
    return %c0_i32, %c0_i32_0 : i32, i32
  }
  func.func @transform_7(%arg0: i32) -> (i32, i32) {
    %c0_i32 = arith.constant 0 : i32
    %c0_i32_0 = arith.constant 0 : i32
    %c0_i32_1 = arith.constant 0 : i32
    return %c0_i32, %c0_i32_0 : i32, i32
  }
  func.func @transform_8(%arg0: i32) -> (i32, i32) {
    %c0_i32 = arith.constant 0 : i32
    %c0_i32_0 = arith.constant 0 : i32
    %c0_i32_1 = arith.constant 0 : i32
    return %c0_i32, %c0_i32_0 : i32, i32
  }
  func.func @transform_9(%arg0: i32) -> (i32, i32) {
    %c0_i32 = arith.constant 0 : i32
    %c0_i32_0 = arith.constant 0 : i32
    return %arg0, %c0_i32 : i32, i32
  }
}

</mosaic_0001>

<llo_original>
// kernel: light_hyper_classifier.1
$region0: #{light_hyper_classifier.1}
  #allocation0 [shape = 'u32[]', space=smem, size = 0x4, offset = 0x4, fixed_abs, tag = 'smem constant byte address 0x4 - core index']
  #allocation1 [shape = 'u32[144,128]{1,0:T(1,128)}', space=vmem, size = 0x12000, scoped, tag = 'internal scratch']
  %s0 = inlined_call_operand.vmem [shape: f32[2,16,8], index: 0, kind: input, shape index: {}]
  %s1 = inlined_call_operand.vmem [shape: f32[8,32], index: 1, kind: input, shape index: {}]
  %s2 = inlined_call_operand.vmem [shape: f32[1,32], index: 2, kind: input, shape index: {}]
  %s3 = inlined_call_operand.vmem [shape: f32[32,16], index: 3, kind: input, shape index: {}]
  %s4 = inlined_call_operand.vmem [shape: f32[1,16], index: 4, kind: input, shape index: {}]
  %s5 = inlined_call_operand.vmem [shape: f32[16,16], index: 5, kind: input, shape index: {}]
  %s6 = inlined_call_operand.vmem [shape: f32[1,16], index: 6, kind: input, shape index: {}]
  %s7 = inlined_call_operand.vmem [shape: f32[16,2], index: 7, kind: input, shape index: {}]
  %s8 = inlined_call_operand.vmem [shape: f32[1,2], index: 8, kind: input, shape index: {}]
  %s9 = inlined_call_operand.hbm [shape: f32[2,2], index: 9, kind: output, shape index: {}]
  %s10 = sld [smem:[#allocation0]]
  $region46: #{light_hyper_classifier.1} parent=0
    _
  %s12 = ssub.s32 1, %s10
  %s13 = scalar_select 0, %s12, %s10
  $region1: #{light_hyper_classifier.1} parent=0
    #allocation2 [shape = 'u8[1024]{0}', space=vmem, size = 0x400, scoped, tag = 'output window, operand 0, single buffered']
    #allocation3 [shape = 's32[1]{0}', space=sflag, size = 0x4, scoped, tag = 'scoped memory for light_hyper_classifier.1']
    %14 = vsyncpa [#allocation3], 0
    // Predicated region
    $region2: #{light_hyper_classifier.1} parent=1 // pred_check
      _
    $region3: #{light_hyper_classifier.1} parent=1 // pred_check_branch
      %16 = sbr.rel (0) target = $region5
    $region4: #{light_hyper_classifier.1} parent=1 // pred_region
      _
    $region5: #{light_hyper_classifier.1} parent=1 // pred_fallthru
      _
    // Predicated region
    $region6: #{light_hyper_classifier.1} parent=1 // pred_check
      _
    $region7: #{light_hyper_classifier.1} parent=1 // pred_check_branch
      %18 = sbr.rel (0) target = $region9
    $region8: #{light_hyper_classifier.1} parent=1 // pred_region
      _
    $region9: #{light_hyper_classifier.1} parent=1 // pred_fallthru
      _
    // Predicated region
    $region10: #{light_hyper_classifier.1} parent=1 // pred_check
      _
    $region11: #{light_hyper_classifier.1} parent=1 // pred_check_branch
      %20 = sbr.rel (0) target = $region13
    $region12: #{light_hyper_classifier.1} parent=1 // pred_region
      _
    $region13: #{light_hyper_classifier.1} parent=1 // pred_fallthru
      _
    // Predicated region
    $region14: #{light_hyper_classifier.1} parent=1 // pred_check
      _
    $region15: #{light_hyper_classifier.1} parent=1 // pred_check_branch
      %22 = sbr.rel (0) target = $region17
    $region16: #{light_hyper_classifier.1} parent=1 // pred_region
      _
    $region17: #{light_hyper_classifier.1} parent=1 // pred_fallthru
      _
    // Predicated region
    $region18: #{light_hyper_classifier.1} parent=1 // pred_check
      _
    $region19: #{light_hyper_classifier.1} parent=1 // pred_check_branch
      %24 = sbr.rel (0) target = $region21
    $region20: #{light_hyper_classifier.1} parent=1 // pred_region
      _
    $region21: #{light_hyper_classifier.1} parent=1 // pred_fallthru
      _
    // Predicated region
    $region22: #{light_hyper_classifier.1} parent=1 // pred_check
      _
    $region23: #{light_hyper_classifier.1} parent=1 // pred_check_branch
      %26 = sbr.rel (0) target = $region25
    $region24: #{light_hyper_classifier.1} parent=1 // pred_region
      _
    $region25: #{light_hyper_classifier.1} parent=1 // pred_fallthru
      _
    // Predicated region
    $region26: #{light_hyper_classifier.1} parent=1 // pred_check
      _
    $region27: #{light_hyper_classifier.1} parent=1 // pred_check_branch
      %28 = sbr.rel (0) target = $region29
    $region28: #{light_hyper_classifier.1} parent=1 // pred_region
      _
    $region29: #{light_hyper_classifier.1} parent=1 // pred_fallthru
      _
    // Predicated region
    $region30: #{light_hyper_classifier.1} parent=1 // pred_check
      _
    $region31: #{light_hyper_classifier.1} parent=1 // pred_check_branch
      %30 = sbr.rel (0) target = $region33
    $region32: #{light_hyper_classifier.1} parent=1 // pred_region
      _
    $region33: #{light_hyper_classifier.1} parent=1 // pred_fallthru
      _
    // Predicated region
    $region34: #{light_hyper_classifier.1} parent=1 // pred_check
      _
    $region35: #{light_hyper_classifier.1} parent=1 // pred_check_branch
      %32 = sbr.rel (0) target = $region37
    $region36: #{light_hyper_classifier.1} parent=1 // pred_region
      _
    $region37: #{light_hyper_classifier.1} parent=1 // pred_fallthru
      _
    %v33 = vld [vmem:[%s0] sm:$0xff]
    %v34 = vld [vmem:[%s0 + $0x8] sm:$0xff]
    %v35 = vld [vmem:[%s0 + $0x10] sm:$0xff]
    %v36 = vld [vmem:[%s0 + $0x18] sm:$0xff]
    %v37 = vld [vmem:[%s1] sm:$0xff]
    %v38 = vld [vmem:[%s2] sm:$0x1]
    %v40 = vlaneseq
    %v41 = vshrl.u32 %v40, 7
    %v42 = vsub.s32 0, %v41
    %v43 = vrot.slane %v38, %v42
    %vm45 = vcmask 64512
    %v47 = vsel %vm45, %v33, 0
    %v50 = vsel %vm45, %v34, 0
    %v53 = vsel %vm45, %v35, 0
    %v56 = vsel %vm45, %v36, 0
    %58 = vmatprep.subr.mxu0 0.0
    %59 = vmatpush1.msra.mxu0 %v37
    %60 = vmatprep.subr.mxu0 0.0
    %61 = vmatpush1.msra.mxu0 0.0
    %62 = vmatprep.subr.mxu0 0.0
    %63 = vmatpush1.msra.mxu0 0.0
    %64 = vmatprep.subr.mxu0 0.0
    %65 = vmatpush1.msra.mxu0 0.0
    %66 = vmatprep.subr.mxu0 0.0
    %67 = vmatpush1.msra.mxu0 0.0
    %68 = vmatprep.subr.mxu0 0.0
    %69 = vmatpush1.msra.mxu0 0.0
    %70 = vmatprep.subr.mxu0 0.0
    %71 = vmatpush1.msra.mxu0 0.0
    %72 = vmatprep.subr.mxu0 0.0
    %73 = vmatpush1.msra.mxu0 0.0
    %74 = vmatprep.subr.mxu0 0.0
    %75 = vmatpush1.msra.mxu0 0.0
    %76 = vmatprep.subr.mxu0 0.0
    %77 = vmatpush1.msra.mxu0 0.0
    %78 = vmatprep.subr.mxu0 0.0
    %79 = vmatpush1.msra.mxu0 0.0
    %80 = vmatprep.subr.mxu0 0.0
    %81 = vmatpush1.msra.mxu0 0.0
    %82 = vmatprep.subr.mxu0 0.0
    %83 = vmatpush1.msra.mxu0 0.0
    %84 = vmatprep.subr.mxu0 0.0
    %85 = vmatpush1.msra.mxu0 0.0
    %86 = vmatprep.subr.mxu0 0.0
    %87 = vmatpush1.msra.mxu0 0.0
    %88 = vmatprep.subr.mxu0 0.0
    %89 = vmatpush1.msra.mxu0 0.0
    %90 = vmatprep.subr.mxu0 0.0
    %91 = vmatpush1.msra.mxu0 0.0
    %92 = vmatprep.subr.mxu0 0.0
    %93 = vmatpush1.msra.mxu0 0.0
    %94 = vmatprep.subr.mxu0 0.0
    %95 = vmatpush1.msra.mxu0 0.0
    %96 = vmatprep.subr.mxu0 0.0
    %97 = vmatpush1.msra.mxu0 0.0
    %98 = vmatprep.subr.mxu0 0.0
    %99 = vmatpush1.msra.mxu0 0.0
    %100 = vmatprep.subr.mxu0 0.0
    %101 = vmatpush1.msra.mxu0 0.0
    %102 = vmatprep.subr.mxu0 0.0
    %103 = vmatpush1.msra.mxu0 0.0
    %104 = vmatprep.subr.mxu0 0.0
    %105 = vmatpush1.msra.mxu0 0.0
    %106 = vmatprep.subr.mxu0 0.0
    %107 = vmatpush1.msra.mxu0 0.0
    %108 = vmatprep.subr.mxu0 0.0
    %109 = vmatpush1.msra.mxu0 0.0
    %110 = vmatprep.subr.mxu0 0.0
    %111 = vmatpush1.msra.mxu0 0.0
    %112 = vmatprep.subr.mxu0 0.0
    %113 = vmatpush1.msra.mxu0 0.0
    %114 = vmatprep.subr.mxu0 0.0
    %115 = vmatpush1.msra.mxu0 0.0
    %116 = vmatprep.subr.mxu0 0.0
    %117 = vmatpush1.msra.mxu0 0.0
    %118 = vmatprep.subr.mxu0 0.0
    %119 = vmatpush1.msra.mxu0 0.0
    %120 = vmatprep.subr.mxu0 0.0
    %121 = vmatpush1.msra.mxu0 0.0
    %122 = vmatprep.mubr.f32.mxu0 0.0
    %123 = vmatmul.mubr.f32.gmra.mrb[0].mxu0 %v47
    %v124 = vpop.f32.mrb[0].mxu0
    %v125 = vadd.f32 %v43, %v124
    %v126 = vpop.f32.mrb[0].mxu0
    %127 = vmatprep.mubr.f32.mxu0 0.0
    %128 = vmatmul.mubr.f32.gmra.mrb[0].mxu0 %v50
    %v129 = vpop.f32.mrb[0].mxu0
    %v130 = vadd.f32 %v43, %v129
    %v131 = vpop.f32.mrb[0].mxu0
    %132 = vmatprep.mubr.f32.mxu0 0.0
    %133 = vmatmul.mubr.f32.gmra.mrb[0].mxu0 %v53
    %v134 = vpop.f32.mrb[0].mxu0
    %v135 = vadd.f32 %v43, %v134
    %v136 = vpop.f32.mrb[0].mxu0
    %137 = vmatprep.mubr.f32.mxu0 0.0
    %138 = vmatmul.mubr.f32.gmra.mrb[0].mxu0 %v56
    %v139 = vpop.f32.mrb[0].mxu0
    %v140 = vadd.f32 %v43, %v139
    %v141 = vpop.f32.mrb[0].mxu0
    %142 = vdwg.mxu0
    %v143 = vmax.f32 %v125, 0.0
    %v144 = vmax.f32 %v130, 0.0
    %v145 = vmax.f32 %v135, 0.0
    %v146 = vmax.f32 %v140, 0.0
    %v147 = vld [vmem:[%s3] sm:$0xff]
    %v148 = vld [vmem:[%s3 + $0x8] sm:$0xff]
    %v149 = vld [vmem:[%s3 + $0x10] sm:$0xff]
    %v150 = vld [vmem:[%s3 + $0x18] sm:$0xff]
    %v151 = vld [vmem:[%s4] sm:$0x1]
    %v153 = vlaneseq
    %v154 = vshrl.u32 %v153, 7
    %v155 = vsub.s32 0, %v154
    %v156 = vrot.slane %v151, %v155
    %vm158 = vcmask 261120
    %v160 = vsel %vm158, %v143, 0
    %v163 = vsel %vm158, %v144, 0
    %v166 = vsel %vm158, %v145, 0
    %v169 = vsel %vm158, %v146, 0
    %171 = vmatprep.subr.mxu0 0.0
    %172 = vmatpush1.msra.mxu0 %v147
    %173 = vmatprep.subr.mxu0 0.0
    %174 = vmatpush1.msra.mxu0 %v148
    %175 = vmatprep.subr.mxu0 0.0
    %176 = vmatpush1.msra.mxu0 %v149
    %177 = vmatprep.subr.mxu0 0.0
    %178 = vmatpush1.msra.mxu0 %v150
    %179 = vmatprep.subr.mxu0 0.0
    %180 = vmatpush1.msra.mxu0 0.0
    %181 = vmatprep.subr.mxu0 0.0
    %182 = vmatpush1.msra.mxu0 0.0
    %183 = vmatprep.subr.mxu0 0.0
    %184 = vmatpush1.msra.mxu0 0.0
    %185 = vmatprep.subr.mxu0 0.0
    %186 = vmatpush1.msra.mxu0 0.0
    %187 = vmatprep.subr.mxu0 0.0
    %188 = vmatpush1.msra.mxu0 0.0
    %189 = vmatprep.subr.mxu0 0.0
    %190 = vmatpush1.msra.mxu0 0.0
    %191 = vmatprep.subr.mxu0 0.0
    %192 = vmatpush1.msra.mxu0 0.0
    %193 = vmatprep.subr.mxu0 0.0
    %194 = vmatpush1.msra.mxu0 0.0
    %195 = vmatprep.subr.mxu0 0.0
    %196 = vmatpush1.msra.mxu0 0.0
    %197 = vmatprep.subr.mxu0 0.0
    %198 = vmatpush1.msra.mxu0 0.0
    %199 = vmatprep.subr.mxu0 0.0
    %200 = vmatpush1.msra.mxu0 0.0
    %201 = vmatprep.subr.mxu0 0.0
    %202 = vmatpush1.msra.mxu0 0.0
    %203 = vmatprep.subr.mxu0 0.0
    %204 = vmatpush1.msra.mxu0 0.0
    %205 = vmatprep.subr.mxu0 0.0
    %206 = vmatpush1.msra.mxu0 0.0
    %207 = vmatprep.subr.mxu0 0.0
    %208 = vmatpush1.msra.mxu0 0.0
    %209 = vmatprep.subr.mxu0 0.0
    %210 = vmatpush1.msra.mxu0 0.0
    %211 = vmatprep.subr.mxu0 0.0
    %212 = vmatpush1.msra.mxu0 0.0
    %213 = vmatprep.subr.mxu0 0.0
    %214 = vmatpush1.msra.mxu0 0.0
    %215 = vmatprep.subr.mxu0 0.0
    %216 = vmatpush1.msra.mxu0 0.0
    %217 = vmatprep.subr.mxu0 0.0
    %218 = vmatpush1.msra.mxu0 0.0
    %219 = vmatprep.subr.mxu0 0.0
    %220 = vmatpush1.msra.mxu0 0.0
    %221 = vmatprep.subr.mxu0 0.0
    %222 = vmatpush1.msra.mxu0 0.0
    %223 = vmatprep.subr.mxu0 0.0
    %224 = vmatpush1.msra.mxu0 0.0
    %225 = vmatprep.subr.mxu0 0.0
    %226 = vmatpush1.msra.mxu0 0.0
    %227 = vmatprep.subr.mxu0 0.0
    %228 = vmatpush1.msra.mxu0 0.0
    %229 = vmatprep.subr.mxu0 0.0
    %230 = vmatpush1.msra.mxu0 0.0
    %231 = vmatprep.subr.mxu0 0.0
    %232 = vmatpush1.msra.mxu0 0.0
    %233 = vmatprep.subr.mxu0 0.0
    %234 = vmatpush1.msra.mxu0 0.0
    %235 = vmatprep.mubr.f32.mxu0 0.0
    %236 = vmatmul.mubr.f32.gmra.mrb[0].mxu0 %v160
    %v237 = vpop.f32.mrb[0].mxu0
    %v238 = vadd.f32 %v156, %v237
    %v239 = vpop.f32.mrb[0].mxu0
    %240 = vmatprep.mubr.f32.mxu0 0.0
    %241 = vmatmul.mubr.f32.gmra.mrb[0].mxu0 %v163
    %v242 = vpop.f32.mrb[0].mxu0
    %v243 = vadd.f32 %v156, %v242
    %v244 = vpop.f32.mrb[0].mxu0
    %245 = vmatprep.mubr.f32.mxu0 0.0
    %246 = vmatmul.mubr.f32.gmra.mrb[0].mxu0 %v166
    %v247 = vpop.f32.mrb[0].mxu0
    %v248 = vadd.f32 %v156, %v247
    %v249 = vpop.f32.mrb[0].mxu0
    %250 = vmatprep.mubr.f32.mxu0 0.0
    %251 = vmatmul.mubr.f32.gmra.mrb[0].mxu0 %v169
    %v252 = vpop.f32.mrb[0].mxu0
    %v253 = vadd.f32 %v156, %v252
    %v254 = vpop.f32.mrb[0].mxu0
    %255 = vdwg.mxu0
    %v256 = vld [vmem:[%s5] sm:$0xff]
    %v257 = vld [vmem:[%s5 + $0x8] sm:$0xff]
    %v258 = vld [vmem:[%s6] sm:$0x1]
    %v260 = vlaneseq
    %v261 = vshrl.u32 %v260, 7
    %v262 = vsub.s32 0, %v261
    %v263 = vrot.slane %v258, %v262
    %vm265 = vcmask 130048
    %v267 = vsel %vm265, %v238, 0
    %v270 = vsel %vm265, %v243, 0
    %v273 = vsel %vm265, %v248, 0
    %v276 = vsel %vm265, %v253, 0
    %278 = vmatprep.subr.mxu0 0.0
    %279 = vmatpush1.msra.mxu0 %v256
    %280 = vmatprep.subr.mxu0 0.0
    %281 = vmatpush1.msra.mxu0 %v257
    %282 = vmatprep.subr.mxu0 0.0
    %283 = vmatpush1.msra.mxu0 0.0
    %284 = vmatprep.subr.mxu0 0.0
    %285 = vmatpush1.msra.mxu0 0.0
    %286 = vmatprep.subr.mxu0 0.0
    %287 = vmatpush1.msra.mxu0 0.0
    %288 = vmatprep.subr.mxu0 0.0
    %289 = vmatpush1.msra.mxu0 0.0
    %290 = vmatprep.subr.mxu0 0.0
    %291 = vmatpush1.msra.mxu0 0.0
    %292 = vmatprep.subr.mxu0 0.0
    %293 = vmatpush1.msra.mxu0 0.0
    %294 = vmatprep.subr.mxu0 0.0
    %295 = vmatpush1.msra.mxu0 0.0
    %296 = vmatprep.subr.mxu0 0.0
    %297 = vmatpush1.msra.mxu0 0.0
    %298 = vmatprep.subr.mxu0 0.0
    %299 = vmatpush1.msra.mxu0 0.0
    %300 = vmatprep.subr.mxu0 0.0
    %301 = vmatpush1.msra.mxu0 0.0
    %302 = vmatprep.subr.mxu0 0.0
    %303 = vmatpush1.msra.mxu0 0.0
    %304 = vmatprep.subr.mxu0 0.0
    %305 = vmatpush1.msra.mxu0 0.0
    %306 = vmatprep.subr.mxu0 0.0
    %307 = vmatpush1.msra.mxu0 0.0
    %308 = vmatprep.subr.mxu0 0.0
    %309 = vmatpush1.msra.mxu0 0.0
    %310 = vmatprep.subr.mxu0 0.0
    %311 = vmatpush1.msra.mxu0 0.0
    %312 = vmatprep.subr.mxu0 0.0
    %313 = vmatpush1.msra.mxu0 0.0
    %314 = vmatprep.subr.mxu0 0.0
    %315 = vmatpush1.msra.mxu0 0.0
    %316 = vmatprep.subr.mxu0 0.0
    %317 = vmatpush1.msra.mxu0 0.0
    %318 = vmatprep.subr.mxu0 0.0
    %319 = vmatpush1.msra.mxu0 0.0
    %320 = vmatprep.subr.mxu0 0.0
    %321 = vmatpush1.msra.mxu0 0.0
    %322 = vmatprep.subr.mxu0 0.0
    %323 = vmatpush1.msra.mxu0 0.0
    %324 = vmatprep.subr.mxu0 0.0
    %325 = vmatpush1.msra.mxu0 0.0
    %326 = vmatprep.subr.mxu0 0.0
    %327 = vmatpush1.msra.mxu0 0.0
    %328 = vmatprep.subr.mxu0 0.0
    %329 = vmatpush1.msra.mxu0 0.0
    %330 = vmatprep.subr.mxu0 0.0
    %331 = vmatpush1.msra.mxu0 0.0
    %332 = vmatprep.subr.mxu0 0.0
    %333 = vmatpush1.msra.mxu0 0.0
    %334 = vmatprep.subr.mxu0 0.0
    %335 = vmatpush1.msra.mxu0 0.0
    %336 = vmatprep.subr.mxu0 0.0
    %337 = vmatpush1.msra.mxu0 0.0
    %338 = vmatprep.subr.mxu0 0.0
    %339 = vmatpush1.msra.mxu0 0.0
    %340 = vmatprep.subr.mxu0 0.0
    %341 = vmatpush1.msra.mxu0 0.0
    %342 = vmatprep.mubr.f32.mxu0 0.0
    %343 = vmatmul.mubr.f32.gmra.mrb[0].mxu0 %v267
    %v344 = vpop.f32.mrb[0].mxu0
    %v345 = vadd.f32 %v263, %v344
    %v346 = vpop.f32.mrb[0].mxu0
    %347 = vmatprep.mubr.f32.mxu0 0.0
    %348 = vmatmul.mubr.f32.gmra.mrb[0].mxu0 %v270
    %v349 = vpop.f32.mrb[0].mxu0
    %v350 = vadd.f32 %v263, %v349
    %v351 = vpop.f32.mrb[0].mxu0
    %352 = vmatprep.mubr.f32.mxu0 0.0
    %353 = vmatmul.mubr.f32.gmra.mrb[0].mxu0 %v273
    %v354 = vpop.f32.mrb[0].mxu0
    %v355 = vadd.f32 %v263, %v354
    %v356 = vpop.f32.mrb[0].mxu0
    %357 = vmatprep.mubr.f32.mxu0 0.0
    %358 = vmatmul.mubr.f32.gmra.mrb[0].mxu0 %v276
    %v359 = vpop.f32.mrb[0].mxu0
    %v360 = vadd.f32 %v263, %v359
    %v361 = vpop.f32.mrb[0].mxu0
    %362 = vdwg.mxu0
    %v363 = vmax.f32 %v345, 0.0
    %v364 = vmax.f32 %v350, 0.0
    %v365 = vmax.f32 %v355, 0.0
    %v366 = vmax.f32 %v360, 0.0
    %v367 = vsel %vm265, %v363, 0.0
    %v368 = vsel %vm265, %v364, 0.0
    %v369 = vadd.f32 %v367, %v368
    %v370 = vrot.slane %v369, 4
    %v371 = vadd.f32 %v369, %v370
    %v372 = vrot.slane %v371, 2
    %v373 = vadd.f32 %v371, %v372
    %v374 = vrot.slane %v373, 1
    %v375 = vadd.f32 %v373, %v374
    %v376 = vsel %vm265, %v365, 0.0
    %v377 = vsel %vm265, %v366, 0.0
    %v378 = vadd.f32 %v376, %v377
    %v379 = vrot.slane %v378, 4
    %v380 = vadd.f32 %v378, %v379
    %v381 = vrot.slane %v380, 2
    %v382 = vadd.f32 %v380, %v381
    %v383 = vrot.slane %v382, 1
    %v384 = vadd.f32 %v382, %v383
    %v385 = vrcp.pop 16.0
    %v386 = vmul.f32 %v375, %v385
    %v387 = vmul.f32 %v384, %v385
    %v388 = vld [vmem:[%s7] sm:$0xff]
    %v389 = vld [vmem:[%s7 + $0x8] sm:$0xff]
    %v390 = vld [vmem:[%s8] sm:$0x1]
    %v392 = vlaneseq
    %v393 = vshrl.u32 %v392, 7
    %v394 = vsub.s32 0, %v393
    %v395 = vrot.slane %v390, %v394
    %vm399 = vcmask 1041409
    %v400 = vsel %vm399, %v387, %v386
    %v401 = vsel %vm265, %v400, 0
    %403 = vmatprep.subr.mxu0 0.0
    %404 = vmatpush1.msra.mxu0 %v388
    %405 = vmatprep.subr.mxu0 0.0
    %406 = vmatpush1.msra.mxu0 %v389
    %407 = vmatprep.subr.mxu0 0.0
    %408 = vmatpush1.msra.mxu0 0.0
    %409 = vmatprep.subr.mxu0 0.0
    %410 = vmatpush1.msra.mxu0 0.0
    %411 = vmatprep.subr.mxu0 0.0
    %412 = vmatpush1.msra.mxu0 0.0
    %413 = vmatprep.subr.mxu0 0.0
    %414 = vmatpush1.msra.mxu0 0.0
    %415 = vmatprep.subr.mxu0 0.0
    %416 = vmatpush1.msra.mxu0 0.0
    %417 = vmatprep.subr.mxu0 0.0
    %418 = vmatpush1.msra.mxu0 0.0
    %419 = vmatprep.subr.mxu0 0.0
    %420 = vmatpush1.msra.mxu0 0.0
    %421 = vmatprep.subr.mxu0 0.0
    %422 = vmatpush1.msra.mxu0 0.0
    %423 = vmatprep.subr.mxu0 0.0
    %424 = vmatpush1.msra.mxu0 0.0
    %425 = vmatprep.subr.mxu0 0.0
    %426 = vmatpush1.msra.mxu0 0.0
    %427 = vmatprep.subr.mxu0 0.0
    %428 = vmatpush1.msra.mxu0 0.0
    %429 = vmatprep.subr.mxu0 0.0
    %430 = vmatpush1.msra.mxu0 0.0
    %431 = vmatprep.subr.mxu0 0.0
    %432 = vmatpush1.msra.mxu0 0.0
    %433 = vmatprep.subr.mxu0 0.0
    %434 = vmatpush1.msra.mxu0 0.0
    %435 = vmatprep.subr.mxu0 0.0
    %436 = vmatpush1.msra.mxu0 0.0
    %437 = vmatprep.subr.mxu0 0.0
    %438 = vmatpush1.msra.mxu0 0.0
    %439 = vmatprep.subr.mxu0 0.0
    %440 = vmatpush1.msra.mxu0 0.0
    %441 = vmatprep.subr.mxu0 0.0
    %442 = vmatpush1.msra.mxu0 0.0
    %443 = vmatprep.subr.mxu0 0.0
    %444 = vmatpush1.msra.mxu0 0.0
    %445 = vmatprep.subr.mxu0 0.0
    %446 = vmatpush1.msra.mxu0 0.0
    %447 = vmatprep.subr.mxu0 0.0
    %448 = vmatpush1.msra.mxu0 0.0
    %449 = vmatprep.subr.mxu0 0.0
    %450 = vmatpush1.msra.mxu0 0.0
    %451 = vmatprep.subr.mxu0 0.0
    %452 = vmatpush1.msra.mxu0 0.0
    %453 = vmatprep.subr.mxu0 0.0
    %454 = vmatpush1.msra.mxu0 0.0
    %455 = vmatprep.subr.mxu0 0.0
    %456 = vmatpush1.msra.mxu0 0.0
    %457 = vmatprep.subr.mxu0 0.0
    %458 = vmatpush1.msra.mxu0 0.0
    %459 = vmatprep.subr.mxu0 0.0
    %460 = vmatpush1.msra.mxu0 0.0
    %461 = vmatprep.subr.mxu0 0.0
    %462 = vmatpush1.msra.mxu0 0.0
    %463 = vmatprep.subr.mxu0 0.0
    %464 = vmatpush1.msra.mxu0 0.0
    %465 = vmatprep.subr.mxu0 0.0
    %466 = vmatpush1.msra.mxu0 0.0
    %467 = vmatprep.mubr.f32.mxu0 0.0
    %468 = vmatmul.mubr.f32.gmra.mrb[0].mxu0 %v401
    %v469 = vpop.f32.mrb[0].mxu0
    %v470 = vadd.f32 %v395, %v469
    %v471 = vpop.f32.mrb[0].mxu0
    %472 = vdwg.mxu0
    %vm473 = vcmask 9216
    %474 = vst.msk [vmem:[#allocation2] sm:$0x3] %vm473, %v470
    // Predicated region
    $region38: #{light_hyper_classifier.1} parent=1 // pred_check
      _
    $region39: #{light_hyper_classifier.1} parent=1 // pred_check_branch
      %476 = sbr.rel (0) target = $region41
    $region40: #{light_hyper_classifier.1} parent=1 // pred_region
      %s478 = ssub.s32 32, 32
      %479 = vsyncadd [#allocation3], %s478
      %s481 = sshll.u32 [#allocation2], 4
      %s482 = int_to_ptr.vmem [resolvable:$true] %s481
      %484 = dma.vmem_to_hbm [thread:$0]  %s482, 32, %s9, [#allocation3]
    $region41: #{light_hyper_classifier.1} parent=1 // pred_fallthru
      _
    // Predicated region
    $region42: #{light_hyper_classifier.1} parent=1 // pred_check
      _
    $region43: #{light_hyper_classifier.1} parent=1 // pred_check_branch
      %486 = sbr.rel (0) target = $region45
    $region44: #{light_hyper_classifier.1} parent=1 // pred_region
      %487 = dma.done [#allocation3], 32
    $region45: #{light_hyper_classifier.1} parent=1 // pred_fallthru
      _
    %488 = vsyncpa [#allocation3], 1

</llo_original>
